<compile_context>
chip_gen: v7x
topology: tpu7x:2x2x1
jax: 0.10.0
libtpu: 0.0.40
codegen_flags: <defaults>
</compile_context>

<pallas_src>
import functools

import jax
import jax.numpy as jnp
from jax import lax
from jax.experimental import pallas as pl
from jax.experimental.pallas import tpu as pltpu

EPS = 1e-5  # nn.BatchNorm2d default eps


@functools.lru_cache(maxsize=None)
def _vmem_limit_bytes():
    """Per-generation scoped-VMEM budget: ~3/4 of physical, capped; safe fallback."""
    try:
        cap = getattr(pltpu.get_tpu_info(), "vmem_capacity_bytes", None)
        if cap:
            return int(min(cap * 3 // 4, 100 * 1024 * 1024))
    except Exception:
        pass
    return 32 * 1024 * 1024  # conservative, works on v5e/v6e/v7x


def conv_pool_kernel(xw_ref, w_ref, pooled_ref, stats_ref):
    """Conv3x3(p=1, no bias) + MaxPool2x2 for ONE row-strip + BN partial stats.

    xw_ref:     (4, Th+1, Wo, 3*Cin) bf16  kx-prefolded, row-polyphase strip:
                xw[2*py+dx, u, j, kx*Cin+c] = xpad[2u+py, 2j+dx+kx, c]
    w_ref:      (9*Cin, Cpad)        bf16  im2col conv weight (zero-padded cols).
    pooled_ref: (Th*Wo, Cpad)        bf16  conv+maxpool rows for this strip.
    stats_ref:  (8, Cpad)            f32   per-strip [sum; sumsq; 6 zero rows].
    """
    _, thp1, wo, _ = xw_ref.shape
    th = thp1 - 1
    m = th * wo
    kdim, cpad = w_ref.shape

    w = w_ref[...]  # bf16 MXU operand

    # 2x2/2 max-pool == elementwise max over the 4 pooling phases; each phase is
    # ONE MXU matmul (Th*Wo, 9*Cin) @ (9*Cin, Cpad) with its LHS assembled in
    # bf16 from 3 static, stride-1 row slices (kx taps already folded into K).
    pooled = None
    for dy in range(2):
        for dx in range(2):
            taps = []
            for ky in range(3):
                sy = dy + ky
                comp = 2 * (sy % 2) + dx          # row-parity / dx component
                oy = sy // 2                      # 0 or 1 (halo row)
                taps.append(xw_ref[comp, oy:oy + th, :, :])   # (Th, Wo, 3*Cin) bf16
            lhs = jnp.concatenate(taps, axis=-1).reshape(m, kdim)  # (Th*Wo, 9*Cin)
            conv = jnp.dot(lhs, w, preferred_element_type=jnp.float32)
            pooled = conv if pooled is None else jnp.maximum(pooled, conv)

    # bf16 storage of the pooled intermediate (halves pass-1 writeback / pass-2 read).
    pooled_ref[...] = pooled.astype(pooled_ref.dtype)

    # Per-strip BN partial statistics from the f32 values (before the bf16 cast),
    # written once as a full 8-sublane block (unmasked stores, no revisits).
    s1 = jnp.sum(pooled, axis=0, keepdims=True)
    s2 = jnp.sum(pooled * pooled, axis=0, keepdims=True)
    stats_ref[...] = jnp.concatenate(
        [s1, s2, jnp.zeros((6, cpad), jnp.float32)], axis=0)


def bn_relu_kernel(pooled_ref, scale_ref, bias_ref, o_ref):
    """y = pooled * scale + bias ; ReLU  (scale/bias fold mean/var/gamma/beta)."""
    y = pooled_ref[...].astype(jnp.float32) * scale_ref[...] + bias_ref[...]
    o_ref[...] = jnp.maximum(y, 0.0)


def _pick_strip_rows(ho, wo, target_rows=1024):
    """Largest Th dividing Ho with Th*Wo <= target (and sublane-friendly)."""
    smallest_valid = ho
    for th in range(ho, 0, -1):
        if ho % th or (th * wo) % 8:
            continue
        if th * wo <= target_rows:
            return th
        smallest_valid = th
    return smallest_valid


def maxblock_forward(x_nchw, w_oihw, gamma, beta, *, compute_dtype=jnp.bfloat16):
    n, cin, h, w = x_nchw.shape
    cout = w_oihw.shape[0]
    assert h % 2 == 0 and w % 2 == 0, "MaxPool2d(2,2) needs even H, W"
    ho, wo = h // 2, w // 2
    rows = n * ho * wo
    assert (ho * wo) % 8 == 0, "per-image pooled rows must be a multiple of 8"
    kdim = 9 * cin
    # Lane-dense channel padding; round to 256 when Cout > 128 (v6e/v7x MXU width).
    cpad = 128 if cout <= 128 else ((cout + 255) // 256) * 256
    vmem_limit = _vmem_limit_bytes()

    # ---- Layout prep (wrapper): NCHW -> NHWC bf16, pad by 1, then a kx-prefolded
    # row-polyphase relayout (3x the *input* bytes only):
    #   xw[n, 2*py+dx, u, j, kx*Cin+c] = xpad[n, 2u+py, 2j+dx+kx, c]
    x_nhwc = jnp.transpose(x_nchw, (0, 2, 3, 1)).astype(compute_dtype)
    xpad = jnp.pad(x_nhwc, ((0, 0), (1, 1), (1, 1), (0, 0)))   # (N, H+2, W+2, Cin)

    comps = []
    for py in range(2):
        rows_py = xpad[:, py::2, :, :]                          # (N, Ho+1, W+2, Cin)
        for dx in range(2):
            taps = [rows_py[:, :, dx + kx::2, :][:, :, :wo, :] for kx in range(3)]
            comps.append(jnp.concatenate(taps, axis=-1))        # (N, Ho+1, Wo, 3*Cin)
    xw = jnp.stack(comps, axis=1)                               # (N, 4, Ho+1, Wo, 3*Cin)

    # Strips of pooled rows (+1 halo row duplicated here so BlockSpec stays trivial).
    th = _pick_strip_rows(ho, wo)
    n_strips = ho // th
    strips = [xw[:, :, s * th: s * th + th + 1] for s in range(n_strips)]
    xw_strips = (jnp.stack(strips, axis=1)                      # (N, S, 4, Th+1, Wo, 3Cin)
                 .reshape(n * n_strips * 4, th + 1, wo, 3 * cin))
    n_steps = n * n_strips
    m_strip = th * wo

    # Conv weight OIHW -> im2col (9*Cin, Cout), zero-padded to Cpad lanes, bf16.
    w_mat = jnp.transpose(w_oihw, (2, 3, 1, 0)).reshape(kdim, cout)
    w_mat = jnp.pad(w_mat, ((0, 0), (0, cpad - cout))).astype(compute_dtype)

    # ---- Pass 1: conv + max-pool + per-strip BN partial stats (parallel grid) ----
    pooled, stats = pl.pallas_call(
        conv_pool_kernel,
        out_shape=(jax.ShapeDtypeStruct((rows, cpad), compute_dtype),
                   jax.ShapeDtypeStruct((n_steps * 8, cpad), jnp.float32)),
        grid=(n_steps,),
        in_specs=[
            pl.BlockSpec((4, th + 1, wo, 3 * cin), lambda i: (i, 0, 0, 0)),
            pl.BlockSpec((kdim, cpad), lambda i: (0, 0)),
        ],
        out_specs=(
            pl.BlockSpec((m_strip, cpad), lambda i: (i, 0)),
            pl.BlockSpec((8, cpad), lambda i: (i, 0)),
        ),
        compiler_params=pltpu.CompilerParams(
            dimension_semantics=("parallel",),   # no revisited blocks -> megacore OK
            vmem_limit_bytes=vmem_limit),
    )(xw_strips, w_mat)

    # Reduce the tiny (n_steps, 8, Cpad) partials; fold BN (training-mode, biased
    # variance) into per-channel scale/bias.  (E[x^2]-E[x]^2 in f32; clamped.)
    stats3 = stats.reshape(n_steps, 8, cpad)
    s1 = jnp.sum(stats3[:, 0, :], axis=0)
    s2 = jnp.sum(stats3[:, 1, :], axis=0)
    cnt = jnp.float32(rows)
    mean = s1 / cnt
    var = jnp.maximum(s2 / cnt - mean * mean, 0.0)
    inv = lax.rsqrt(var + EPS)
    gamma_p = jnp.pad(gamma.astype(jnp.float32), (0, cpad - cout))
    beta_p = jnp.pad(beta.astype(jnp.float32), (0, cpad - cout))
    scale = (gamma_p * inv).reshape(1, cpad)
    bias = (beta_p - mean * gamma_p * inv).reshape(1, cpad)

    # ---- Pass 2: normalize + ReLU over large lane-dense row tiles (parallel) ----
    tile = min(rows, 2048)                       # rows is a multiple of 8
    out2d = pl.pallas_call(
        bn_relu_kernel,
        out_shape=jax.ShapeDtypeStruct((rows, cpad), jnp.float32),
        grid=(pl.cdiv(rows, tile),),
        in_specs=[
            pl.BlockSpec((tile, cpad), lambda i: (i, 0)),
            pl.BlockSpec((1, cpad), lambda i: (0, 0)),
            pl.BlockSpec((1, cpad), lambda i: (0, 0)),
        ],
        out_specs=pl.BlockSpec((tile, cpad), lambda i: (i, 0)),
        compiler_params=pltpu.CompilerParams(
            dimension_semantics=("parallel",),
            vmem_limit_bytes=vmem_limit),
    )(pooled, scale, bias)

    # (rows, Cpad) -> strip channel padding -> (N, Ho, Wo, Cout) -> NCHW
    out_nhwc = out2d[:, :cout].reshape(n, ho, wo, cout)
    return jnp.transpose(out_nhwc, (0, 3, 1, 2))


def maxblock_reference(x_nchw, w_oihw, gamma, beta):
    """Pure-JAX/XLA reference matching the PyTorch forward (training-mode BN)."""
    y = lax.conv_general_dilated(
        x_nchw, w_oihw, window_strides=(1, 1),
        padding=((1, 1), (1, 1)),
        dimension_numbers=("NCHW", "OIHW", "NCHW"),
    )
    y = lax.reduce_window(y, -jnp.inf, lax.max, (1, 1, 2, 2), (1, 1, 2, 2), "VALID")
    mean = jnp.mean(y, axis=(0, 2, 3), keepdims=True)
    var = jnp.mean((y - mean) ** 2, axis=(0, 2, 3), keepdims=True)
    y = (y - mean) * lax.rsqrt(var + EPS)
    y = y * gamma.reshape(1, -1, 1, 1) + beta.reshape(1, -1, 1, 1)
    return jnp.maximum(y, 0.0)


if __name__ == "__main__":
    # Small shapes consistent with the module: N=2, inC=4, H=W=16, outC=8
    N, IN_C, OUT_C, H, W = 2, 4, 8, 16, 16

    key = jax.random.PRNGKey(0)
    kx, kw, kg, kb = jax.random.split(key, 4)
    x = jax.random.normal(kx, (N, IN_C, H, W), dtype=jnp.float32)
    w = jax.random.normal(kw, (OUT_C, IN_C, 3, 3), dtype=jnp.float32) * 0.1
    gamma = 1.0 + 0.1 * jax.random.normal(kg, (OUT_C,), dtype=jnp.float32)
    beta = 0.1 * jax.random.normal(kb, (OUT_C,), dtype=jnp.float32)

    out = jax.jit(maxblock_forward)(x, w, gamma, beta)
    out = jax.block_until_ready(out)

    ref = maxblock_reference(x, w, gamma, beta)
    assert out.shape == (N, OUT_C, H // 2, W // 2), out.shape
    # bf16 MXU operands + bf16 pooled storage (f32 accumulate / f32 epilogue).
    assert jnp.allclose(out, ref, atol=3e-2, rtol=3e-2), (
        float(jnp.max(jnp.abs(out - ref)))
    )

    print("KERNEL_OK")
</pallas_src>

<mosaic_0001>
module attributes {stable_mosaic.version = 11 : i64} {
  func.func @conv_pool_kernel(%arg0: i32, %arg1: memref<4x9x8x12xbf16, #tpu.memory_space<vmem>>, %arg2: memref<36x128xbf16, #tpu.memory_space<vmem>>, %arg3: memref<64x128xbf16, #tpu.memory_space<vmem>>, %arg4: memref<8x128xf32, #tpu.memory_space<vmem>>) attributes {dimension_semantics = [#tpu.dimension_semantics<parallel>], iteration_bounds = array<i64: 2>, scalar_prefetch = 0 : i64, scratch_operands = 0 : i64, tpu.core_type = #tpu.core_type<tc>, window_params = [{transform_indices = @transform_0, window_bounds = array<i64: 4, 9, 8, 12>}, {pipeline_mode = #tpu.pipeline_mode<synchronous>, transform_indices = @transform_1, window_bounds = array<i64: 36, 128>}, {transform_indices = @transform_2, window_bounds = array<i64: 64, 128>}, {transform_indices = @transform_3, window_bounds = array<i64: 8, 128>}]} {
    %c0 = arith.constant 0 : index
    %c0_0 = arith.constant 0 : index
    %0 = vector.load %arg2[%c0, %c0_0] : memref<36x128xbf16, #tpu.memory_space<vmem>>, vector<36x128xbf16>
    %c0_1 = arith.constant 0 : index
    %c0_2 = arith.constant 0 : index
    %c0_3 = arith.constant 0 : index
    %c0_4 = arith.constant 0 : index
    %1 = vector.load %arg1[%c0_1, %c0_2, %c0_3, %c0_4] : memref<4x9x8x12xbf16, #tpu.memory_space<vmem>>, vector<1x8x8x12xbf16>
    %2 = vector.shape_cast %1 : vector<1x8x8x12xbf16> to vector<8x8x12xbf16>
    %c2 = arith.constant 2 : index
    %c0_5 = arith.constant 0 : index
    %c0_6 = arith.constant 0 : index
    %c0_7 = arith.constant 0 : index
    %3 = vector.load %arg1[%c2, %c0_5, %c0_6, %c0_7] : memref<4x9x8x12xbf16, #tpu.memory_space<vmem>>, vector<1x8x8x12xbf16>
    %4 = vector.shape_cast %3 : vector<1x8x8x12xbf16> to vector<8x8x12xbf16>
    %c0_8 = arith.constant 0 : index
    %c1 = arith.constant 1 : index
    %c0_9 = arith.constant 0 : index
    %c0_10 = arith.constant 0 : index
    %5 = vector.load %arg1[%c0_8, %c1, %c0_9, %c0_10] : memref<4x9x8x12xbf16, #tpu.memory_space<vmem>>, vector<1x8x8x12xbf16>
    %6 = vector.shape_cast %5 : vector<1x8x8x12xbf16> to vector<8x8x12xbf16>
    %7 = tpu.concatenate %2, %4, %6 in 2 : vector<8x8x12xbf16>, vector<8x8x12xbf16>, vector<8x8x12xbf16> -> vector<8x8x36xbf16>
    %8 = vector.shape_cast %7 : vector<8x8x36xbf16> to vector<64x36xbf16>
    %cst = arith.constant dense<0.000000e+00> : vector<64x128xf32>
    %9 = tpu.matmul %8, %0, %cst {dimension_numbers = #tpu.dot_dimension_numbers<[1], [0], [0], [1], [0, 0, 1, 1], [], []>} : vector<64x36xbf16>, vector<36x128xbf16>, vector<64x128xf32> -> vector<64x128xf32>
    %c1_11 = arith.constant 1 : index
    %c0_12 = arith.constant 0 : index
    %c0_13 = arith.constant 0 : index
    %c0_14 = arith.constant 0 : index
    %10 = vector.load %arg1[%c1_11, %c0_12, %c0_13, %c0_14] : memref<4x9x8x12xbf16, #tpu.memory_space<vmem>>, vector<1x8x8x12xbf16>
    %11 = vector.shape_cast %10 : vector<1x8x8x12xbf16> to vector<8x8x12xbf16>
    %c3 = arith.constant 3 : index
    %c0_15 = arith.constant 0 : index
    %c0_16 = arith.constant 0 : index
    %c0_17 = arith.constant 0 : index
    %12 = vector.load %arg1[%c3, %c0_15, %c0_16, %c0_17] : memref<4x9x8x12xbf16, #tpu.memory_space<vmem>>, vector<1x8x8x12xbf16>
    %13 = vector.shape_cast %12 : vector<1x8x8x12xbf16> to vector<8x8x12xbf16>
    %c1_18 = arith.constant 1 : index
    %c1_19 = arith.constant 1 : index
    %c0_20 = arith.constant 0 : index
    %c0_21 = arith.constant 0 : index
    %14 = vector.load %arg1[%c1_18, %c1_19, %c0_20, %c0_21] : memref<4x9x8x12xbf16, #tpu.memory_space<vmem>>, vector<1x8x8x12xbf16>
    %15 = vector.shape_cast %14 : vector<1x8x8x12xbf16> to vector<8x8x12xbf16>
    %16 = tpu.concatenate %11, %13, %15 in 2 : vector<8x8x12xbf16>, vector<8x8x12xbf16>, vector<8x8x12xbf16> -> vector<8x8x36xbf16>
    %17 = vector.shape_cast %16 : vector<8x8x36xbf16> to vector<64x36xbf16>
    %cst_22 = arith.constant dense<0.000000e+00> : vector<64x128xf32>
    %18 = tpu.matmul %17, %0, %cst_22 {dimension_numbers = #tpu.dot_dimension_numbers<[1], [0], [0], [1], [0, 0, 1, 1], [], []>} : vector<64x36xbf16>, vector<36x128xbf16>, vector<64x128xf32> -> vector<64x128xf32>
    %19 = arith.maximumf %9, %18 : vector<64x128xf32>
    %c2_23 = arith.constant 2 : index
    %c0_24 = arith.constant 0 : index
    %c0_25 = arith.constant 0 : index
    %c0_26 = arith.constant 0 : index
    %20 = vector.load %arg1[%c2_23, %c0_24, %c0_25, %c0_26] : memref<4x9x8x12xbf16, #tpu.memory_space<vmem>>, vector<1x8x8x12xbf16>
    %21 = vector.shape_cast %20 : vector<1x8x8x12xbf16> to vector<8x8x12xbf16>
    %c0_27 = arith.constant 0 : index
    %c1_28 = arith.constant 1 : index
    %c0_29 = arith.constant 0 : index
    %c0_30 = arith.constant 0 : index
    %22 = vector.load %arg1[%c0_27, %c1_28, %c0_29, %c0_30] : memref<4x9x8x12xbf16, #tpu.memory_space<vmem>>, vector<1x8x8x12xbf16>
    %23 = vector.shape_cast %22 : vector<1x8x8x12xbf16> to vector<8x8x12xbf16>
    %c2_31 = arith.constant 2 : index
    %c1_32 = arith.constant 1 : index
    %c0_33 = arith.constant 0 : index
    %c0_34 = arith.constant 0 : index
    %24 = vector.load %arg1[%c2_31, %c1_32, %c0_33, %c0_34] : memref<4x9x8x12xbf16, #tpu.memory_space<vmem>>, vector<1x8x8x12xbf16>
    %25 = vector.shape_cast %24 : vector<1x8x8x12xbf16> to vector<8x8x12xbf16>
    %26 = tpu.concatenate %21, %23, %25 in 2 : vector<8x8x12xbf16>, vector<8x8x12xbf16>, vector<8x8x12xbf16> -> vector<8x8x36xbf16>
    %27 = vector.shape_cast %26 : vector<8x8x36xbf16> to vector<64x36xbf16>
    %cst_35 = arith.constant dense<0.000000e+00> : vector<64x128xf32>
    %28 = tpu.matmul %27, %0, %cst_35 {dimension_numbers = #tpu.dot_dimension_numbers<[1], [0], [0], [1], [0, 0, 1, 1], [], []>} : vector<64x36xbf16>, vector<36x128xbf16>, vector<64x128xf32> -> vector<64x128xf32>
    %29 = arith.maximumf %19, %28 : vector<64x128xf32>
    %c3_36 = arith.constant 3 : index
    %c0_37 = arith.constant 0 : index
    %c0_38 = arith.constant 0 : index
    %c0_39 = arith.constant 0 : index
    %30 = vector.load %arg1[%c3_36, %c0_37, %c0_38, %c0_39] : memref<4x9x8x12xbf16, #tpu.memory_space<vmem>>, vector<1x8x8x12xbf16>
    %31 = vector.shape_cast %30 : vector<1x8x8x12xbf16> to vector<8x8x12xbf16>
    %c1_40 = arith.constant 1 : index
    %c1_41 = arith.constant 1 : index
    %c0_42 = arith.constant 0 : index
    %c0_43 = arith.constant 0 : index
    %32 = vector.load %arg1[%c1_40, %c1_41, %c0_42, %c0_43] : memref<4x9x8x12xbf16, #tpu.memory_space<vmem>>, vector<1x8x8x12xbf16>
    %33 = vector.shape_cast %32 : vector<1x8x8x12xbf16> to vector<8x8x12xbf16>
    %c3_44 = arith.constant 3 : index
    %c1_45 = arith.constant 1 : index
    %c0_46 = arith.constant 0 : index
    %c0_47 = arith.constant 0 : index
    %34 = vector.load %arg1[%c3_44, %c1_45, %c0_46, %c0_47] : memref<4x9x8x12xbf16, #tpu.memory_space<vmem>>, vector<1x8x8x12xbf16>
    %35 = vector.shape_cast %34 : vector<1x8x8x12xbf16> to vector<8x8x12xbf16>
    %36 = tpu.concatenate %31, %33, %35 in 2 : vector<8x8x12xbf16>, vector<8x8x12xbf16>, vector<8x8x12xbf16> -> vector<8x8x36xbf16>
    %37 = vector.shape_cast %36 : vector<8x8x36xbf16> to vector<64x36xbf16>
    %cst_48 = arith.constant dense<0.000000e+00> : vector<64x128xf32>
    %38 = tpu.matmul %37, %0, %cst_48 {dimension_numbers = #tpu.dot_dimension_numbers<[1], [0], [0], [1], [0, 0, 1, 1], [], []>} : vector<64x36xbf16>, vector<36x128xbf16>, vector<64x128xf32> -> vector<64x128xf32>
    %39 = arith.maximumf %29, %38 : vector<64x128xf32>
    %40 = arith.truncf %39 : vector<64x128xf32> to vector<64x128xbf16>
    %c0_49 = arith.constant 0 : index
    %c0_50 = arith.constant 0 : index
    %41 = vector.load %arg3[%c0_49, %c0_50] : memref<64x128xbf16, #tpu.memory_space<vmem>>, vector<64x128xbf16>
    tpu.vector_store %arg3[%c0_49, %c0_50], %40 {strides = array<i32>} : memref<64x128xbf16, #tpu.memory_space<vmem>>, vector<64x128xbf16>,
    %cst_51 = arith.constant dense<0.000000e+00> : vector<128xf32>
    %42 = vector.multi_reduction <add>, %39, %cst_51 [0] : vector<64x128xf32> to vector<128xf32>
    %43 = vector.shape_cast %42 : vector<128xf32> to vector<1x128xf32>
    %44 = arith.mulf %39, %39 : vector<64x128xf32>
    %cst_52 = arith.constant dense<0.000000e+00> : vector<128xf32>
    %45 = vector.multi_reduction <add>, %44, %cst_52 [0] : vector<64x128xf32> to vector<128xf32>
    %46 = vector.shape_cast %45 : vector<128xf32> to vector<1x128xf32>
    %cst_53 = arith.constant 0.000000e+00 : f32
    %47 = vector.broadcast %cst_53 : f32 to vector<6x128xf32>
    %48 = tpu.concatenate %43, %46, %47 in 0 : vector<1x128xf32>, vector<1x128xf32>, vector<6x128xf32> -> vector<8x128xf32>
    %c0_54 = arith.constant 0 : index
    %c0_55 = arith.constant 0 : index
    %49 = vector.load %arg4[%c0_54, %c0_55] : memref<8x128xf32, #tpu.memory_space<vmem>>, vector<8x128xf32>
    tpu.vector_store %arg4[%c0_54, %c0_55], %48 {strides = array<i32>} : memref<8x128xf32, #tpu.memory_space<vmem>>, vector<8x128xf32>,
    return
  }
  func.func @transform_0(%arg0: i32) -> (i32, i32, i32, i32) {
    %c0_i32 = arith.constant 0 : i32
    %c0_i32_0 = arith.constant 0 : i32
    %c0_i32_1 = arith.constant 0 : i32
    %c0_i32_2 = arith.constant 0 : i32
    return %arg0, %c0_i32, %c0_i32_0, %c0_i32_1 : i32, i32, i32, i32
  }
  func.func @transform_1(%arg0: i32) -> (i32, i32) {
    %c0_i32 = arith.constant 0 : i32
    %c0_i32_0 = arith.constant 0 : i32
    %c0_i32_1 = arith.constant 0 : i32
    return %c0_i32, %c0_i32_0 : i32, i32
  }
  func.func @transform_2(%arg0: i32) -> (i32, i32) {
    %c0_i32 = arith.constant 0 : i32
    %c0_i32_0 = arith.constant 0 : i32
    return %arg0, %c0_i32 : i32, i32
  }
  func.func @transform_3(%arg0: i32) -> (i32, i32) {
    %c0_i32 = arith.constant 0 : i32
    %c0_i32_0 = arith.constant 0 : i32
    return %arg0, %c0_i32 : i32, i32
  }
}

module attributes {stable_mosaic.version = 11 : i64} {
  func.func @bn_relu_kernel(%arg0: i32, %arg1: memref<128x128xbf16, #tpu.memory_space<vmem>>, %arg2: memref<1x128xf32, #tpu.memory_space<vmem>>, %arg3: memref<1x128xf32, #tpu.memory_space<vmem>>, %arg4: memref<128x128xf32, #tpu.memory_space<vmem>>) attributes {dimension_semantics = [#tpu.dimension_semantics<parallel>], iteration_bounds = array<i64: 1>, scalar_prefetch = 0 : i64, scratch_operands = 0 : i64, tpu.core_type = #tpu.core_type<tc>, window_params = [{transform_indices = @transform_0, window_bounds = array<i64: 128, 128>}, {pipeline_mode = #tpu.pipeline_mode<synchronous>, transform_indices = @transform_1, window_bounds = array<i64: 1, 128>}, {pipeline_mode = #tpu.pipeline_mode<synchronous>, transform_indices = @transform_2, window_bounds = array<i64: 1, 128>}, {transform_indices = @transform_3, window_bounds = array<i64: 128, 128>}]} {
    %c0 = arith.constant 0 : index
    %c0_0 = arith.constant 0 : index
    %0 = vector.load %arg1[%c0, %c0_0] : memref<128x128xbf16, #tpu.memory_space<vmem>>, vector<128x128xbf16>
    %1 = arith.extf %0 : vector<128x128xbf16> to vector<128x128xf32>
    %c0_1 = arith.constant 0 : index
    %c0_2 = arith.constant 0 : index
    %2 = vector.load %arg2[%c0_1, %c0_2] : memref<1x128xf32, #tpu.memory_space<vmem>>, vector<1x128xf32>
    %3 = vector.broadcast %2 : vector<1x128xf32> to vector<128x128xf32>
    %4 = arith.mulf %1, %3 : vector<128x128xf32>
    %c0_3 = arith.constant 0 : index
    %c0_4 = arith.constant 0 : index
    %5 = vector.load %arg3[%c0_3, %c0_4] : memref<1x128xf32, #tpu.memory_space<vmem>>, vector<1x128xf32>
    %6 = vector.broadcast %5 : vector<1x128xf32> to vector<128x128xf32>
    %7 = arith.addf %4, %6 : vector<128x128xf32>
    %cst = arith.constant 0.000000e+00 : f32
    %8 = vector.broadcast %cst : f32 to vector<128x128xf32>
    %9 = arith.maximumf %7, %8 : vector<128x128xf32>
    %c0_5 = arith.constant 0 : index
    %c0_6 = arith.constant 0 : index
    %10 = vector.load %arg4[%c0_5, %c0_6] : memref<128x128xf32, #tpu.memory_space<vmem>>, vector<128x128xf32>
    tpu.vector_store %arg4[%c0_5, %c0_6], %9 {strides = array<i32>} : memref<128x128xf32, #tpu.memory_space<vmem>>, vector<128x128xf32>,
    return
  }
  func.func @transform_0(%arg0: i32) -> (i32, i32) {
    %c0_i32 = arith.constant 0 : i32
    %c0_i32_0 = arith.constant 0 : i32
    return %arg0, %c0_i32 : i32, i32
  }
  func.func @transform_1(%arg0: i32) -> (i32, i32) {
    %c0_i32 = arith.constant 0 : i32
    %c0_i32_0 = arith.constant 0 : i32
    %c0_i32_1 = arith.constant 0 : i32
    return %c0_i32, %c0_i32_0 : i32, i32
  }
  func.func @transform_2(%arg0: i32) -> (i32, i32) {
    %c0_i32 = arith.constant 0 : i32
    %c0_i32_0 = arith.constant 0 : i32
    %c0_i32_1 = arith.constant 0 : i32
    return %c0_i32, %c0_i32_0 : i32, i32
  }
  func.func @transform_3(%arg0: i32) -> (i32, i32) {
    %c0_i32 = arith.constant 0 : i32
    %c0_i32_0 = arith.constant 0 : i32
    return %arg0, %c0_i32 : i32, i32
  }
}

</mosaic_0001>

<llo_original>
// kernel: maxblock_forward.3
$region0: #{maxblock_forward.3}
  #allocation0 [shape = 'u32[]', space=smem, size = 0x4, offset = 0x4, fixed_abs, tag = 'smem constant byte address 0x4 - core index']
  #allocation1 [shape = 'u32[144,128]{1,0:T(1,128)}', space=vmem, size = 0x12000, scoped, tag = 'internal scratch']
  %s0 = inlined_call_operand.vmem [shape: bf16[128,128], index: 0, kind: input, shape index: {}]
  %s1 = inlined_call_operand.vmem [shape: f32[1,128], index: 1, kind: input, shape index: {}]
  %s2 = inlined_call_operand.vmem [shape: f32[1,128], index: 2, kind: input, shape index: {}]
  %s3 = inlined_call_operand.vmem [shape: f32[128,128], index: 3, kind: output, shape index: {}]
  %s4 = sld [smem:[#allocation0]]
  $region22: #{maxblock_forward.3} parent=0
    _
  %s6 = ssub.s32 1, %s4
  %s7 = scalar_select 0, %s6, %s4
  // Predicated region
  $region2: #{maxblock_forward.3} parent=0 // pred_check
    _
  $region3: #{maxblock_forward.3} parent=0 // pred_check_branch
    %9 = sbr.rel (0) target = $region5
  $region4: #{maxblock_forward.3} parent=0 // pred_region
    _
  $region5: #{maxblock_forward.3} parent=0 // pred_fallthru
    _
  // Predicated region
  $region6: #{maxblock_forward.3} parent=0 // pred_check
    _
  $region7: #{maxblock_forward.3} parent=0 // pred_check_branch
    %11 = sbr.rel (0) target = $region9
  $region8: #{maxblock_forward.3} parent=0 // pred_region
    _
  $region9: #{maxblock_forward.3} parent=0 // pred_fallthru
    _
  // Predicated region
  $region10: #{maxblock_forward.3} parent=0 // pred_check
    _
  $region11: #{maxblock_forward.3} parent=0 // pred_check_branch
    %13 = sbr.rel (0) target = $region13
  $region12: #{maxblock_forward.3} parent=0 // pred_region
    _
  $region13: #{maxblock_forward.3} parent=0 // pred_fallthru
    _
  %v14 = vld [vmem:[%s0] sm:$0xf]
  %v15 = vld [vmem:[%s0 + $0x4] sm:$0xf]
  %v16 = vld [vmem:[%s0 + $0x8] sm:$0xf]
  %v17 = vld [vmem:[%s0 + $0xc] sm:$0xf]
  %v18 = vld [vmem:[%s0 + $0x10] sm:$0xf]
  %v19 = vld [vmem:[%s0 + $0x14] sm:$0xf]
  %v20 = vld [vmem:[%s0 + $0x18] sm:$0xf]
  %v21 = vld [vmem:[%s0 + $0x1c] sm:$0xf]
  %v22 = vld [vmem:[%s0 + $0x20] sm:$0xf]
  %v23 = vld [vmem:[%s0 + $0x24] sm:$0xf]
  %v24 = vld [vmem:[%s0 + $0x28] sm:$0xf]
  %v25 = vld [vmem:[%s0 + $0x2c] sm:$0xf]
  %v26 = vld [vmem:[%s0 + $0x30] sm:$0xf]
  %v27 = vld [vmem:[%s0 + $0x34] sm:$0xf]
  %v28 = vld [vmem:[%s0 + $0x38] sm:$0xf]
  %v29 = vld [vmem:[%s0 + $0x3c] sm:$0xf]
  %v30 = vunpack.c.l.bf16 %v14
  %v31 = vunpack.c.l.bf16 %v15
  %v32 = vunpack.c.l.bf16 %v16
  %v33 = vunpack.c.l.bf16 %v17
  %v34 = vunpack.c.l.bf16 %v18
  %v35 = vunpack.c.l.bf16 %v19
  %v36 = vunpack.c.l.bf16 %v20
  %v37 = vunpack.c.l.bf16 %v21
  %v38 = vunpack.c.l.bf16 %v22
  %v39 = vunpack.c.l.bf16 %v23
  %v40 = vunpack.c.l.bf16 %v24
  %v41 = vunpack.c.l.bf16 %v25
  %v42 = vunpack.c.l.bf16 %v26
  %v43 = vunpack.c.l.bf16 %v27
  %v44 = vunpack.c.l.bf16 %v28
  %v45 = vunpack.c.l.bf16 %v29
  %v46 = vld [vmem:[%s1] sm:$0x1]
  %v48 = vlaneseq
  %v49 = vshrl.u32 %v48, 7
  %v50 = vsub.s32 0, %v49
  %v51 = vrot.slane %v46, %v50
  %v53 = vmul.f32 %v30, %v51
  %v54 = vmul.f32 %v31, %v51
  %v55 = vmul.f32 %v32, %v51
  %v56 = vmul.f32 %v33, %v51
  %v57 = vmul.f32 %v34, %v51
  %v58 = vmul.f32 %v35, %v51
  %v59 = vmul.f32 %v36, %v51
  %v60 = vmul.f32 %v37, %v51
  %v61 = vmul.f32 %v38, %v51
  %v62 = vmul.f32 %v39, %v51
  %v63 = vmul.f32 %v40, %v51
  %v64 = vmul.f32 %v41, %v51
  %v65 = vmul.f32 %v42, %v51
  %v66 = vmul.f32 %v43, %v51
  %v67 = vmul.f32 %v44, %v51
  %v68 = vmul.f32 %v45, %v51
  %v69 = vld [vmem:[%s2] sm:$0x1]
  %v71 = vlaneseq
  %v72 = vshrl.u32 %v71, 7
  %v73 = vsub.s32 0, %v72
  %v74 = vrot.slane %v69, %v73
  %v76 = vadd.f32 %v53, %v74
  %v77 = vadd.f32 %v54, %v74
  %v78 = vadd.f32 %v55, %v74
  %v79 = vadd.f32 %v56, %v74
  %v80 = vadd.f32 %v57, %v74
  %v81 = vadd.f32 %v58, %v74
  %v82 = vadd.f32 %v59, %v74
  %v83 = vadd.f32 %v60, %v74
  %v84 = vadd.f32 %v61, %v74
  %v85 = vadd.f32 %v62, %v74
  %v86 = vadd.f32 %v63, %v74
  %v87 = vadd.f32 %v64, %v74
  %v88 = vadd.f32 %v65, %v74
  %v89 = vadd.f32 %v66, %v74
  %v90 = vadd.f32 %v67, %v74
  %v91 = vadd.f32 %v68, %v74
  %v92 = vmax.f32 %v76, 0.0
  %v93 = vmax.f32 %v77, 0.0
  %v94 = vmax.f32 %v78, 0.0
  %v95 = vmax.f32 %v79, 0.0
  %v96 = vmax.f32 %v80, 0.0
  %v97 = vmax.f32 %v81, 0.0
  %v98 = vmax.f32 %v82, 0.0
  %v99 = vmax.f32 %v83, 0.0
  %v100 = vmax.f32 %v84, 0.0
  %v101 = vmax.f32 %v85, 0.0
  %v102 = vmax.f32 %v86, 0.0
  %v103 = vmax.f32 %v87, 0.0
  %v104 = vmax.f32 %v88, 0.0
  %v105 = vmax.f32 %v89, 0.0
  %v106 = vmax.f32 %v90, 0.0
  %v107 = vmax.f32 %v91, 0.0
  %108 = vst [vmem:[%s3] sm:$0xff] %v92
  %109 = vst [vmem:[%s3 + $0x8] sm:$0xff] %v93
  %110 = vst [vmem:[%s3 + $0x10] sm:$0xff] %v94
  %111 = vst [vmem:[%s3 + $0x18] sm:$0xff] %v95
  %112 = vst [vmem:[%s3 + $0x20] sm:$0xff] %v96
  %113 = vst [vmem:[%s3 + $0x28] sm:$0xff] %v97
  %114 = vst [vmem:[%s3 + $0x30] sm:$0xff] %v98
  %115 = vst [vmem:[%s3 + $0x38] sm:$0xff] %v99
  %116 = vst [vmem:[%s3 + $0x40] sm:$0xff] %v100
  %117 = vst [vmem:[%s3 + $0x48] sm:$0xff] %v101
  %118 = vst [vmem:[%s3 + $0x50] sm:$0xff] %v102
  %119 = vst [vmem:[%s3 + $0x58] sm:$0xff] %v103
  %120 = vst [vmem:[%s3 + $0x60] sm:$0xff] %v104
  %121 = vst [vmem:[%s3 + $0x68] sm:$0xff] %v105
  %122 = vst [vmem:[%s3 + $0x70] sm:$0xff] %v106
  %123 = vst [vmem:[%s3 + $0x78] sm:$0xff] %v107
  // Predicated region
  $region14: #{maxblock_forward.3} parent=0 // pred_check
    _
  $region15: #{maxblock_forward.3} parent=0 // pred_check_branch
    %125 = sbr.rel (0) target = $region17
  $region16: #{maxblock_forward.3} parent=0 // pred_region
    _
  $region17: #{maxblock_forward.3} parent=0 // pred_fallthru
    _
  // Predicated region
  $region18: #{maxblock_forward.3} parent=0 // pred_check
    _
  $region19: #{maxblock_forward.3} parent=0 // pred_check_branch
    %127 = sbr.rel (0) target = $region21
  $region20: #{maxblock_forward.3} parent=0 // pred_region
    _
  $region21: #{maxblock_forward.3} parent=0 // pred_fallthru
    _

// kernel: maxblock_forward.2
$region0: #{maxblock_forward.2}
  #allocation0 [shape = 'u32[]', space=smem, size = 0x4, offset = 0x4, fixed_abs, tag = 'smem constant byte address 0x4 - core index']
  #allocation1 [shape = 'u32[144,128]{1,0:T(1,128)}', space=vmem, size = 0x12000, scoped, tag = 'internal scratch']
  %s0 = inlined_call_operand.vmem [shape: bf16[8,9,8,12], index: 0, kind: input, shape index: {}]
  %s1 = inlined_call_operand.vmem [shape: bf16[36,128], index: 1, kind: input, shape index: {}]
  %s2 = inlined_call_operand.vmem [shape: bf16[128,128], index: 2, kind: output, shape index: {0}]
  %s3 = inlined_call_operand.vmem [shape: f32[16,128], index: 3, kind: output, shape index: {1}]
  %4 = xla_tuple %s2, %s3
  %s5 = sld [smem:[#allocation0]]
  $region49: #{maxblock_forward.2} parent=0
    _
  %s7 = ssub.s32 1, %s5
  %s8 = scalar_select 0, %s7, %s5
  loop: start=0, step=1, limit=4
  $region2: #{maxblock_forward.2} parent=0 // loop_pre_header
    _
  $region3: #{maxblock_forward.2} parent=0 // loop_header
    %s10 = sphi 0, %s14
    %p11 = scmp.ge.s32.totalorder %s10, 4
    %s20 = sphi 0, %s22
    %s23 = sphi 0, %s20
    %s24 = sphi 0, %s23
    %s40 = sphi 0, %s24
    %s44 = sphi 0, %s44
    %s46 = sphi 0, %s44
    %s47 = sphi 0, %s46
    %s61 = sphi 0, %s47
    %s67 = sphi 0, %s69
    %s70 = sphi 0, %s67
    %s71 = sphi 0, %s70
    %s87 = sphi 0, %s71
    %s93 = sphi 0, %s95
    %s96 = sphi 0, %s93
    %s97 = sphi 0, %s96
    %s113 = sphi 0, %s97
  $region4: #{maxblock_forward.2} parent=0 // loop_header_branch
    %13 = sbr.rel (%p11) target = $region8
  $region5: #{maxblock_forward.2} parent=0 // loop_body
    %s15 = ssub.s32 %s10, 1
    %s16 = ssub.s32 %s10, 2
    %s17 = sadd.s32 %s10, 1
    %s18 = ssub.s32 %s10, %s17
    %p19 = scmp.eq.s32.totalorder %s18, 0
    %s21 = sadd.s32 %s20, 1
    %s22 = scalar_select %p19, %s20, %s21
    %p25 = pneg %p19
    %p26 = scmp.eq.s32.totalorder %s10, 1
    %p27 = por %p25, %p26
    %p28 = scmp.ne.s32.totalorder %s20, %s23
    %p29 = scmp.eq.s32.totalorder %s10, 0
    %p30 = por %p28, %p29
    %p31 = scmp.ne.s32.totalorder %s20, %s23
    %p32 = scmp.eq.s32.totalorder %s15, 1
    %p33 = por %p31, %p32
    %p34 = scmp.ne.s32.totalorder %s23, %s24
    %p35 = scmp.eq.s32.totalorder %s15, 0
    %p36 = por %p34, %p35
    %p37 = scmp.ne.s32.totalorder %s23, %s24
    %p38 = scmp.eq.s32.totalorder %s16, 1
    %p39 = por %p37, %p38
    %p41 = scmp.ne.s32.totalorder %s24, %s40
    %p42 = scmp.eq.s32.totalorder %s16, 0
    %p43 = por %p41, %p42
    %s45 = sadd.s32 %s44, 1
    %p48 = scmp.eq.s32.totalorder %s10, 1
    %p49 = scmp.ne.s32.totalorder %s44, %s46
    %p50 = scmp.eq.s32.totalorder %s10, 0
    %p51 = por %p49, %p50
    %p52 = scmp.ne.s32.totalorder %s44, %s46
    %p53 = scmp.eq.s32.totalorder %s15, 1
    %p54 = por %p52, %p53
    %p55 = scmp.ne.s32.totalorder %s46, %s47
    %p56 = scmp.eq.s32.totalorder %s15, 0
    %p57 = por %p55, %p56
    %p58 = scmp.ne.s32.totalorder %s46, %s47
    %p59 = scmp.eq.s32.totalorder %s16, 1
    %p60 = por %p58, %p59
    %p62 = scmp.ne.s32.totalorder %s47, %s61
    %p63 = scmp.eq.s32.totalorder %s16, 0
    %p64 = por %p62, %p63
    %s65 = ssub.s32 %s10, %s17
    %p66 = scmp.eq.s32.totalorder %s65, 0
    %s68 = sadd.s32 %s67, 1
    %s69 = scalar_select %p66, %s67, %s68
    %p72 = pneg %p66
    %p73 = scmp.eq.s32.totalorder %s10, 1
    %p74 = por %p72, %p73
    %p75 = scmp.ne.s32.totalorder %s67, %s70
    %p76 = scmp.eq.s32.totalorder %s10, 0
    %p77 = por %p75, %p76
    %p78 = scmp.ne.s32.totalorder %s67, %s70
    %p79 = scmp.eq.s32.totalorder %s15, 1
    %p80 = por %p78, %p79
    %p81 = scmp.ne.s32.totalorder %s70, %s71
    %p82 = scmp.eq.s32.totalorder %s15, 0
    %p83 = por %p81, %p82
    %p84 = scmp.ne.s32.totalorder %s70, %s71
    %p85 = scmp.eq.s32.totalorder %s16, 1
    %p86 = por %p84, %p85
    %p88 = scmp.ne.s32.totalorder %s71, %s87
    %p89 = scmp.eq.s32.totalorder %s16, 0
    %p90 = por %p88, %p89
    %s91 = ssub.s32 %s10, %s17
    %p92 = scmp.eq.s32.totalorder %s91, 0
    %s94 = sadd.s32 %s93, 1
    %s95 = scalar_select %p92, %s93, %s94
    %p98 = pneg %p92
    %p99 = scmp.eq.s32.totalorder %s10, 1
    %p100 = por %p98, %p99
    %p101 = scmp.ne.s32.totalorder %s93, %s96
    %p102 = scmp.eq.s32.totalorder %s10, 0
    %p103 = por %p101, %p102
    %p104 = scmp.ne.s32.totalorder %s93, %s96
    %p105 = scmp.eq.s32.totalorder %s15, 1
    %p106 = por %p104, %p105
    %p107 = scmp.ne.s32.totalorder %s96, %s97
    %p108 = scmp.eq.s32.totalorder %s15, 0
    %p109 = por %p107, %p108
    %p110 = scmp.ne.s32.totalorder %s96, %s97
    %p111 = scmp.eq.s32.totalorder %s16, 1
    %p112 = por %p110, %p111
    %p114 = scmp.ne.s32.totalorder %s97, %s113
    %p115 = scmp.eq.s32.totalorder %s16, 0
    %p116 = por %p114, %p115
    %p117 = scmp.le.s32.totalorder 1, %s10
    %p118 = scmp.lt.s32.totalorder %s10, 3
    %p119 = pnand %p117, %p118
    %p120 = pneg %p119
    // Predicated region
    $region9: #{maxblock_forward.2} parent=5 // pred_check
      _
    $region10: #{maxblock_forward.2} parent=5 // pred_check_branch
      %122 = sbr.rel (%p119) target = $region12
    $region11: #{maxblock_forward.2} parent=5 // pred_region
      %s123 = ssub.s32 %s10, 1
      // Predicated region
      $region13: #{maxblock_forward.2} parent=11 // pred_check
        %p124 = pneg %p57
      $region14: #{maxblock_forward.2} parent=11 // pred_check_branch
        %126 = sbr.rel (%p124) target = $region16
      $region15: #{maxblock_forward.2} parent=11 // pred_region
        _
      $region16: #{maxblock_forward.2} parent=11 // pred_fallthru
        _
    $region12: #{maxblock_forward.2} parent=5 // pred_fallthru
      _
    %p127 = scmp.lt.s32.totalorder %s10, 2
    // Predicated region
    $region17: #{maxblock_forward.2} parent=5 // pred_check
      %p128 = pneg %p127
    $region18: #{maxblock_forward.2} parent=5 // pred_check_branch
      %130 = sbr.rel (%p128) target = $region20
    $region19: #{maxblock_forward.2} parent=5 // pred_region
      // Predicated region
      $region21: #{maxblock_forward.2} parent=19 // pred_check
        %p131 = pneg %p30
      $region22: #{maxblock_forward.2} parent=19 // pred_check_branch
        %133 = sbr.rel (%p131) target = $region24
      $region23: #{maxblock_forward.2} parent=19 // pred_region
        %s134 = smul.u32 4, %s10
        %p135 = scmp.lt.s32.totalorder %s134, 7
        %s136 = scalar_select %p135, %s134, 7
        %s137 = smul.addr %s136, 9
        %s138 = smul.addr %s137, 4
        %s139 = scalar_lea.vmem %s0, %s138
        %s140 = smul.u32 4, %s10
      $region24: #{maxblock_forward.2} parent=19 // pred_fallthru
        _
    $region20: #{maxblock_forward.2} parent=5 // pred_fallthru
      _
    %p141 = scmp.le.s32.totalorder 1, %s10
    %p142 = scmp.lt.s32.totalorder %s10, 3
    %p143 = pnand %p141, %p142
    %p144 = pneg %p143
    // Predicated region
    $region25: #{maxblock_forward.2} parent=5 // pred_check
      _
    $region26: #{maxblock_forward.2} parent=5 // pred_check_branch
      %146 = sbr.rel (%p143) target = $region28
    $region27: #{maxblock_forward.2} parent=5 // pred_region
      %s147 = ssub.s32 %s10, 1
      %s148 = smul.u32 4, %s15
      %p149 = scmp.lt.s32.totalorder %s148, 7
      %s150 = scalar_select %p149, %s148, 7
      %s151 = smul.addr %s150, 9
      %s152 = smul.addr %s151, 4
      %s153 = scalar_lea.vmem %s0, %s152
      %p154 = pneg %p36
      %p155 = pneg %p33
      %p156 = pneg %p57
      %p157 = pneg %p54
      %p158 = pneg %p83
      %p159 = pneg %p80
      %s160 = smul.u32 8, %s15
      %p161 = scmp.lt.s32.totalorder %s160, 15
      %s162 = scalar_select %p161, %s160, 15
      %s163 = smul.addr %s162, 4
      %s164 = scalar_lea.vmem %s2, %s163
      %p165 = pneg %p109
      %p166 = pneg %p106
      %p167 = scmp.lt.s32.totalorder %s15, 1
      %s168 = scalar_select %p167, %s15, 1
      %s169 = smul.addr %s168, 8
      %s170 = scalar_lea.vmem %s3, %s169
      %s171 = smul.u32 4, %s15
      %p172 = scmp.lt.s32.totalorder %s171, 7
      %s173 = scalar_select %p172, %s171, 7
      %s174 = smul.addr %s173, 9
      %s175 = smul.addr %s174, 4
      %s176 = scalar_lea.vmem %s0, %s175
      %s177 = smul.u32 4, %s15
      %s178 = smul.u32 8, %s15
      %p179 = scmp.lt.s32.totalorder %s178, 15
      %s180 = scalar_select %p179, %s178, 15
      %s181 = smul.addr %s180, 4
      %s182 = scalar_lea.vmem %s2, %s181
      %s183 = smul.u32 8, %s15
      %p184 = scmp.lt.s32.totalorder %s15, 1
      %s185 = scalar_select %p184, %s15, 1
      %s186 = smul.addr %s185, 8
      %s187 = scalar_lea.vmem %s3, %s186
      %v189 = vld [vmem:[%s1] sm:$0xf]
      %v190 = vld [vmem:[%s1 + $0x4] sm:$0xf]
      %v191 = vld [vmem:[%s1 + $0x8] sm:$0xf]
      %v192 = vld [vmem:[%s1 + $0xc] sm:$0xf]
      %v193 = vld [vmem:[%s1 + $0x10] sm:$0x3]
      %v194 = vld [vmem:[%s176] sm:$0xf]
      %v195 = vld [vmem:[%s176 + $0x4] sm:$0xf]
      %v196 = vld [vmem:[%s176 + $0x8] sm:$0xf]
      %v197 = vld [vmem:[%s176 + $0xc] sm:$0xf]
      %v198 = vld [vmem:[%s176 + $0x10] sm:$0xf]
      %v199 = vld [vmem:[%s176 + $0x14] sm:$0xf]
      %v200 = vld [vmem:[%s176 + $0x18] sm:$0xf]
      %v201 = vld [vmem:[%s176 + $0x1c] sm:$0xf]
      %s202 = scalar_lea.vmem %s176, 72
      %v203 = vld [vmem:[%s202] sm:$0xf]
      %v204 = vld [vmem:[%s202 + $0x4] sm:$0xf]
      %v205 = vld [vmem:[%s202 + $0x8] sm:$0xf]
      %v206 = vld [vmem:[%s202 + $0xc] sm:$0xf]
      %v207 = vld [vmem:[%s202 + $0x10] sm:$0xf]
      %v208 = vld [vmem:[%s202 + $0x14] sm:$0xf]
      %v209 = vld [vmem:[%s202 + $0x18] sm:$0xf]
      %v210 = vld [vmem:[%s202 + $0x1c] sm:$0xf]
      %s211 = scalar_lea.vmem %s176, 4
      %v212 = vld [vmem:[%s211] sm:$0xf]
      %v213 = vld [vmem:[%s211 + $0x4] sm:$0xf]
      %v214 = vld [vmem:[%s211 + $0x8] sm:$0xf]
      %v215 = vld [vmem:[%s211 + $0xc] sm:$0xf]
      %v216 = vld [vmem:[%s211 + $0x10] sm:$0xf]
      %v217 = vld [vmem:[%s211 + $0x14] sm:$0xf]
      %v218 = vld [vmem:[%s211 + $0x18] sm:$0xf]
      %v219 = vld [vmem:[%s211 + $0x1c] sm:$0xf]
      %v228 = vunpack.c.l.b16 %v203
      %v229 = vunpack.c.l.b16 %v204
      %v230 = vunpack.c.l.b16 %v205
      %v231 = vunpack.c.l.b16 %v206
      %v232 = vunpack.c.l.b16 %v207
      %v233 = vunpack.c.l.b16 %v208
      %v234 = vunpack.c.l.b16 %v209
      %v235 = vunpack.c.l.b16 %v210
      %v236 = vpack.c.b16 %v228, %v228
      %v237 = vpack.c.b16 %v229, %v229
      %v238 = vpack.c.b16 %v230, %v230
      %v239 = vpack.c.b16 %v231, %v231
      %v240 = vpack.c.b16 %v232, %v232
      %v241 = vpack.c.b16 %v233, %v233
      %v242 = vpack.c.b16 %v234, %v234
      %v243 = vpack.c.b16 %v235, %v235
      %244 = vrot.lane.b32.xlu0 %v236, 12
      %v245 = vpop.permute.xlu0 %244
      %246 = vrot.lane.b32.xlu0 %v237, 12
      %v247 = vpop.permute.xlu0 %246
      %248 = vrot.lane.b32.xlu0 %v238, 12
      %v249 = vpop.permute.xlu0 %248
      %250 = vrot.lane.b32.xlu0 %v239, 12
      %v251 = vpop.permute.xlu0 %250
      %252 = vrot.lane.b32.xlu0 %v240, 12
      %v253 = vpop.permute.xlu0 %252
      %254 = vrot.lane.b32.xlu0 %v241, 12
      %v255 = vpop.permute.xlu0 %254
      %256 = vrot.lane.b32.xlu0 %v242, 12
      %v257 = vpop.permute.xlu0 %256
      %258 = vrot.lane.b32.xlu0 %v243, 12
      %v259 = vpop.permute.xlu0 %258
      %v268 = vunpack.c.l.b16 %v212
      %v269 = vunpack.c.l.b16 %v213
      %v270 = vunpack.c.l.b16 %v214
      %v271 = vunpack.c.l.b16 %v215
      %v272 = vunpack.c.l.b16 %v216
      %v273 = vunpack.c.l.b16 %v217
      %v274 = vunpack.c.l.b16 %v218
      %v275 = vunpack.c.l.b16 %v219
      %v276 = vpack.c.b16 %v268, %v268
      %v277 = vpack.c.b16 %v269, %v269
      %v278 = vpack.c.b16 %v270, %v270
      %v279 = vpack.c.b16 %v271, %v271
      %v280 = vpack.c.b16 %v272, %v272
      %v281 = vpack.c.b16 %v273, %v273
      %v282 = vpack.c.b16 %v274, %v274
      %v283 = vpack.c.b16 %v275, %v275
      %284 = vrot.lane.b32.xlu0 %v276, 24
      %v285 = vpop.permute.xlu0 %284
      %286 = vrot.lane.b32.xlu0 %v277, 24
      %v287 = vpop.permute.xlu0 %286
      %288 = vrot.lane.b32.xlu0 %v278, 24
      %v289 = vpop.permute.xlu0 %288
      %290 = vrot.lane.b32.xlu0 %v279, 24
      %v291 = vpop.permute.xlu0 %290
      %292 = vrot.lane.b32.xlu0 %v280, 24
      %v293 = vpop.permute.xlu0 %292
      %294 = vrot.lane.b32.xlu0 %v281, 24
      %v295 = vpop.permute.xlu0 %294
      %296 = vrot.lane.b32.xlu0 %v282, 24
      %v297 = vpop.permute.xlu0 %296
      %298 = vrot.lane.b32.xlu0 %v283, 24
      %v299 = vpop.permute.xlu0 %298
      %vm300 = vcmask 97280
      %v303 = vsel %vm300, %v194, %v245
      %v306 = vsel %vm300, %v195, %v247
      %v309 = vsel %vm300, %v196, %v249
      %v312 = vsel %vm300, %v197, %v251
      %v315 = vsel %vm300, %v198, %v253
      %v318 = vsel %vm300, %v199, %v255
      %v321 = vsel %vm300, %v200, %v257
      %v324 = vsel %vm300, %v201, %v259
      %vm325 = vcmask 195584
      %v327 = vsel %vm325, %v303, %v285
      %v329 = vsel %vm325, %v306, %v287
      %v331 = vsel %vm325, %v309, %v289
      %v333 = vsel %vm325, %v312, %v291
      %v335 = vsel %vm325, %v315, %v293
      %v337 = vsel %vm325, %v318, %v295
      %v339 = vsel %vm325, %v321, %v297
      %v341 = vsel %vm325, %v324, %v299
      %v350 = vunpack.c.l.b16 %v327
      %v351 = vunpack.c.l.b16 %v329
      %v352 = vunpack.c.l.b16 %v331
      %v353 = vunpack.c.l.b16 %v333
      %v354 = vunpack.c.l.b16 %v335
      %v355 = vunpack.c.l.b16 %v337
      %v356 = vunpack.c.l.b16 %v339
      %v357 = vunpack.c.l.b16 %v341
      %v358 = vpack.c.b16 %v351, %v350
      %v359 = vpack.c.b16 %v353, %v352
      %v360 = vpack.c.b16 %v355, %v354
      %v361 = vpack.c.b16 %v357, %v356
      %v367 = vunpack.c.l.b16 %v189
      %v368 = vunpack.c.l.b16 %v190
      %v369 = vunpack.c.l.b16 %v191
      %v370 = vunpack.c.l.b16 %v192
      %v371 = vunpack.c.l.b16 %v193
      %v372 = vpack.c.b16 %v368, %v367
      %v373 = vpack.c.b16 %v370, %v369
      %v374 = vpack.c.b16 %v371, %v371
      %vm377 = vcmask 293888
      %v379 = vsel %vm377, %v358, 0
      %v382 = vsel %vm377, %v359, 0
      %v385 = vsel %vm377, %v360, 0
      %v388 = vsel %vm377, %v361, 0
      %vm390 = vcmask 1041408
      %v392 = vsel %vm390, %v374, 0
      %394 = vmatprep.subr.bf16.mxu0 0
      %395 = vmatpush1.bf16.msra.mxu0 %v372
      %396 = vmatprep.subr.bf16.mxu0 0
      %397 = vmatpush1.bf16.msra.mxu0 %v373
      %398 = vmatprep.subr.bf16.mxu0 0
      %399 = vmatpush1.bf16.msra.mxu0 %v392
      %400 = vmatprep.subr.bf16.mxu0 0
      %401 = vmatpush1.bf16.msra.mxu0 0
      %402 = vmatprep.subr.bf16.mxu0 0
      %403 = vmatpush1.bf16.msra.mxu0 0
      %404 = vmatprep.subr.bf16.mxu0 0
      %405 = vmatpush1.bf16.msra.mxu0 0
      %406 = vmatprep.subr.bf16.mxu0 0
      %407 = vmatpush1.bf16.msra.mxu0 0
      %408 = vmatprep.subr.bf16.mxu0 0
      %409 = vmatpush1.bf16.msra.mxu0 0
      %410 = vmatprep.subr.bf16.mxu0 0
      %411 = vmatpush1.bf16.msra.mxu0 0
      %412 = vmatprep.subr.bf16.mxu0 0
      %413 = vmatpush1.bf16.msra.mxu0 0
      %414 = vmatprep.subr.bf16.mxu0 0
      %415 = vmatpush1.bf16.msra.mxu0 0
      %416 = vmatprep.subr.bf16.mxu0 0
      %417 = vmatpush1.bf16.msra.mxu0 0
      %418 = vmatprep.subr.bf16.mxu0 0
      %419 = vmatpush1.bf16.msra.mxu0 0
      %420 = vmatprep.subr.bf16.mxu0 0
      %421 = vmatpush1.bf16.msra.mxu0 0
      %422 = vmatprep.subr.bf16.mxu0 0
      %423 = vmatpush1.bf16.msra.mxu0 0
      %424 = vmatprep.subr.bf16.mxu0 0
      %425 = vmatpush1.bf16.msra.mxu0 0
      %426 = vmatprep.mubr.bf16.mxu0 0
      %427 = vmatmul.mubr.bf16.gmra.mrb[0].mxu0 %v379
      %v428 = vpop.f32.mrb[0].mxu0
      %v429 = vadd.f32 0.0, %v428
      %v430 = vpop.f32.mrb[0].mxu0
      %v431 = vpop.f32.mrb[0].mxu0
      %v432 = vadd.f32 0.0, %v431
      %v433 = vpop.f32.mrb[0].mxu0
      %434 = vmatprep.mubr.bf16.mxu0 0
      %435 = vmatmul.mubr.bf16.gmra.mrb[0].mxu0 %v382
      %v436 = vpop.f32.mrb[0].mxu0
      %v437 = vadd.f32 0.0, %v436
      %v438 = vpop.f32.mrb[0].mxu0
      %v439 = vpop.f32.mrb[0].mxu0
      %v440 = vadd.f32 0.0, %v439
      %v441 = vpop.f32.mrb[0].mxu0
      %442 = vmatprep.mubr.bf16.mxu0 0
      %443 = vmatmul.mubr.bf16.gmra.mrb[0].mxu0 %v385
      %v444 = vpop.f32.mrb[0].mxu0
      %v445 = vadd.f32 0.0, %v444
      %v446 = vpop.f32.mrb[0].mxu0
      %v447 = vpop.f32.mrb[0].mxu0
      %v448 = vadd.f32 0.0, %v447
      %v449 = vpop.f32.mrb[0].mxu0
      %450 = vmatprep.mubr.bf16.mxu0 0
      %451 = vmatmul.mubr.bf16.gmra.mrb[0].mxu0 %v388
      %v452 = vpop.f32.mrb[0].mxu0
      %v453 = vadd.f32 0.0, %v452
      %v454 = vpop.f32.mrb[0].mxu0
      %v455 = vpop.f32.mrb[0].mxu0
      %v456 = vadd.f32 0.0, %v455
      %v457 = vpop.f32.mrb[0].mxu0
      %458 = vdwg.mxu0
      %s459 = scalar_lea.vmem %s176, 36
      %v460 = vld [vmem:[%s459] sm:$0xf]
      %v461 = vld [vmem:[%s459 + $0x4] sm:$0xf]
      %v462 = vld [vmem:[%s459 + $0x8] sm:$0xf]
      %v463 = vld [vmem:[%s459 + $0xc] sm:$0xf]
      %v464 = vld [vmem:[%s459 + $0x10] sm:$0xf]
      %v465 = vld [vmem:[%s459 + $0x14] sm:$0xf]
      %v466 = vld [vmem:[%s459 + $0x18] sm:$0xf]
      %v467 = vld [vmem:[%s459 + $0x1c] sm:$0xf]
      %s468 = scalar_lea.vmem %s176, 108
      %v469 = vld [vmem:[%s468] sm:$0xf]
      %v470 = vld [vmem:[%s468 + $0x4] sm:$0xf]
      %v471 = vld [vmem:[%s468 + $0x8] sm:$0xf]
      %v472 = vld [vmem:[%s468 + $0xc] sm:$0xf]
      %v473 = vld [vmem:[%s468 + $0x10] sm:$0xf]
      %v474 = vld [vmem:[%s468 + $0x14] sm:$0xf]
      %v475 = vld [vmem:[%s468 + $0x18] sm:$0xf]
      %v476 = vld [vmem:[%s468 + $0x1c] sm:$0xf]
      %s477 = scalar_lea.vmem %s176, 40
      %v478 = vld [vmem:[%s477] sm:$0xf]
      %v479 = vld [vmem:[%s477 + $0x4] sm:$0xf]
      %v480 = vld [vmem:[%s477 + $0x8] sm:$0xf]
      %v481 = vld [vmem:[%s477 + $0xc] sm:$0xf]
      %v482 = vld [vmem:[%s477 + $0x10] sm:$0xf]
      %v483 = vld [vmem:[%s477 + $0x14] sm:$0xf]
      %v484 = vld [vmem:[%s477 + $0x18] sm:$0xf]
      %v485 = vld [vmem:[%s477 + $0x1c] sm:$0xf]
      %v494 = vunpack.c.l.b16 %v469
      %v495 = vunpack.c.l.b16 %v470
      %v496 = vunpack.c.l.b16 %v471
      %v497 = vunpack.c.l.b16 %v472
      %v498 = vunpack.c.l.b16 %v473
      %v499 = vunpack.c.l.b16 %v474
      %v500 = vunpack.c.l.b16 %v475
      %v501 = vunpack.c.l.b16 %v476
      %v502 = vpack.c.b16 %v494, %v494
      %v503 = vpack.c.b16 %v495, %v495
      %v504 = vpack.c.b16 %v496, %v496
      %v505 = vpack.c.b16 %v497, %v497
      %v506 = vpack.c.b16 %v498, %v498
      %v507 = vpack.c.b16 %v499, %v499
      %v508 = vpack.c.b16 %v500, %v500
      %v509 = vpack.c.b16 %v501, %v501
      %510 = vrot.lane.b32.xlu0 %v502, 12
      %v511 = vpop.permute.xlu0 %510
      %512 = vrot.lane.b32.xlu0 %v503, 12
      %v513 = vpop.permute.xlu0 %512
      %514 = vrot.lane.b32.xlu0 %v504, 12
      %v515 = vpop.permute.xlu0 %514
      %516 = vrot.lane.b32.xlu0 %v505, 12
      %v517 = vpop.permute.xlu0 %516
      %518 = vrot.lane.b32.xlu0 %v506, 12
      %v519 = vpop.permute.xlu0 %518
      %520 = vrot.lane.b32.xlu0 %v507, 12
      %v521 = vpop.permute.xlu0 %520
      %522 = vrot.lane.b32.xlu0 %v508, 12
      %v523 = vpop.permute.xlu0 %522
      %524 = vrot.lane.b32.xlu0 %v509, 12
      %v525 = vpop.permute.xlu0 %524
      %v534 = vunpack.c.l.b16 %v478
      %v535 = vunpack.c.l.b16 %v479
      %v536 = vunpack.c.l.b16 %v480
      %v537 = vunpack.c.l.b16 %v481
      %v538 = vunpack.c.l.b16 %v482
      %v539 = vunpack.c.l.b16 %v483
      %v540 = vunpack.c.l.b16 %v484
      %v541 = vunpack.c.l.b16 %v485
      %v542 = vpack.c.b16 %v534, %v534
      %v543 = vpack.c.b16 %v535, %v535
      %v544 = vpack.c.b16 %v536, %v536
      %v545 = vpack.c.b16 %v537, %v537
      %v546 = vpack.c.b16 %v538, %v538
      %v547 = vpack.c.b16 %v539, %v539
      %v548 = vpack.c.b16 %v540, %v540
      %v549 = vpack.c.b16 %v541, %v541
      %550 = vrot.lane.b32.xlu0 %v542, 24
      %v551 = vpop.permute.xlu0 %550
      %552 = vrot.lane.b32.xlu0 %v543, 24
      %v553 = vpop.permute.xlu0 %552
      %554 = vrot.lane.b32.xlu0 %v544, 24
      %v555 = vpop.permute.xlu0 %554
      %556 = vrot.lane.b32.xlu0 %v545, 24
      %v557 = vpop.permute.xlu0 %556
      %558 = vrot.lane.b32.xlu0 %v546, 24
      %v559 = vpop.permute.xlu0 %558
      %560 = vrot.lane.b32.xlu0 %v547, 24
      %v561 = vpop.permute.xlu0 %560
      %562 = vrot.lane.b32.xlu0 %v548, 24
      %v563 = vpop.permute.xlu0 %562
      %564 = vrot.lane.b32.xlu0 %v549, 24
      %v565 = vpop.permute.xlu0 %564
      %v568 = vsel %vm300, %v460, %v511
      %v571 = vsel %vm300, %v461, %v513
      %v574 = vsel %vm300, %v462, %v515
      %v577 = vsel %vm300, %v463, %v517
      %v580 = vsel %vm300, %v464, %v519
      %v583 = vsel %vm300, %v465, %v521
      %v586 = vsel %vm300, %v466, %v523
      %v589 = vsel %vm300, %v467, %v525
      %v591 = vsel %vm325, %v568, %v551
      %v593 = vsel %vm325, %v571, %v553
      %v595 = vsel %vm325, %v574, %v555
      %v597 = vsel %vm325, %v577, %v557
      %v599 = vsel %vm325, %v580, %v559
      %v601 = vsel %vm325, %v583, %v561
      %v603 = vsel %vm325, %v586, %v563
      %v605 = vsel %vm325, %v589, %v565
      %v614 = vunpack.c.l.b16 %v591
      %v615 = vunpack.c.l.b16 %v593
      %v616 = vunpack.c.l.b16 %v595
      %v617 = vunpack.c.l.b16 %v597
      %v618 = vunpack.c.l.b16 %v599
      %v619 = vunpack.c.l.b16 %v601
      %v620 = vunpack.c.l.b16 %v603
      %v621 = vunpack.c.l.b16 %v605
      %v622 = vpack.c.b16 %v615, %v614
      %v623 = vpack.c.b16 %v617, %v616
      %v624 = vpack.c.b16 %v619, %v618
      %v625 = vpack.c.b16 %v621, %v620
      %v627 = vsel %vm377, %v622, 0
      %v630 = vsel %vm377, %v623, 0
      %v633 = vsel %vm377, %v624, 0
      %v636 = vsel %vm377, %v625, 0
      %638 = vmatprep.subr.bf16.mxu0 0
      %639 = vmatpush1.bf16.msra.mxu0 %v372
      %640 = vmatprep.subr.bf16.mxu0 0
      %641 = vmatpush1.bf16.msra.mxu0 %v373
      %642 = vmatprep.subr.bf16.mxu0 0
      %643 = vmatpush1.bf16.msra.mxu0 %v392
      %644 = vmatprep.subr.bf16.mxu0 0
      %645 = vmatpush1.bf16.msra.mxu0 0
      %646 = vmatprep.subr.bf16.mxu0 0
      %647 = vmatpush1.bf16.msra.mxu0 0
      %648 = vmatprep.subr.bf16.mxu0 0
      %649 = vmatpush1.bf16.msra.mxu0 0
      %650 = vmatprep.subr.bf16.mxu0 0
      %651 = vmatpush1.bf16.msra.mxu0 0
      %652 = vmatprep.subr.bf16.mxu0 0
      %653 = vmatpush1.bf16.msra.mxu0 0
      %654 = vmatprep.subr.bf16.mxu0 0
      %655 = vmatpush1.bf16.msra.mxu0 0
      %656 = vmatprep.subr.bf16.mxu0 0
      %657 = vmatpush1.bf16.msra.mxu0 0
      %658 = vmatprep.subr.bf16.mxu0 0
      %659 = vmatpush1.bf16.msra.mxu0 0
      %660 = vmatprep.subr.bf16.mxu0 0
      %661 = vmatpush1.bf16.msra.mxu0 0
      %662 = vmatprep.subr.bf16.mxu0 0
      %663 = vmatpush1.bf16.msra.mxu0 0
      %664 = vmatprep.subr.bf16.mxu0 0
      %665 = vmatpush1.bf16.msra.mxu0 0
      %666 = vmatprep.subr.bf16.mxu0 0
      %667 = vmatpush1.bf16.msra.mxu0 0
      %668 = vmatprep.subr.bf16.mxu0 0
      %669 = vmatpush1.bf16.msra.mxu0 0
      %670 = vmatprep.mubr.bf16.mxu0 0
      %671 = vmatmul.mubr.bf16.gmra.mrb[0].mxu0 %v627
      %v672 = vpop.f32.mrb[0].mxu0
      %v673 = vadd.f32 0.0, %v672
      %v674 = vpop.f32.mrb[0].mxu0
      %v675 = vpop.f32.mrb[0].mxu0
      %v676 = vadd.f32 0.0, %v675
      %v677 = vpop.f32.mrb[0].mxu0
      %678 = vmatprep.mubr.bf16.mxu0 0
      %679 = vmatmul.mubr.bf16.gmra.mrb[0].mxu0 %v630
      %v680 = vpop.f32.mrb[0].mxu0
      %v681 = vadd.f32 0.0, %v680
      %v682 = vpop.f32.mrb[0].mxu0
      %v683 = vpop.f32.mrb[0].mxu0
      %v684 = vadd.f32 0.0, %v683
      %v685 = vpop.f32.mrb[0].mxu0
      %686 = vmatprep.mubr.bf16.mxu0 0
      %687 = vmatmul.mubr.bf16.gmra.mrb[0].mxu0 %v633
      %v688 = vpop.f32.mrb[0].mxu0
      %v689 = vadd.f32 0.0, %v688
      %v690 = vpop.f32.mrb[0].mxu0
      %v691 = vpop.f32.mrb[0].mxu0
      %v692 = vadd.f32 0.0, %v691
      %v693 = vpop.f32.mrb[0].mxu0
      %694 = vmatprep.mubr.bf16.mxu0 0
      %695 = vmatmul.mubr.bf16.gmra.mrb[0].mxu0 %v636
      %v696 = vpop.f32.mrb[0].mxu0
      %v697 = vadd.f32 0.0, %v696
      %v698 = vpop.f32.mrb[0].mxu0
      %v699 = vpop.f32.mrb[0].mxu0
      %v700 = vadd.f32 0.0, %v699
      %v701 = vpop.f32.mrb[0].mxu0
      %702 = vdwg.mxu0
      %v703 = vmax.f32 %v429, %v673
      %v704 = vmax.f32 %v432, %v676
      %v705 = vmax.f32 %v437, %v681
      %v706 = vmax.f32 %v440, %v684
      %v707 = vmax.f32 %v445, %v689
      %v708 = vmax.f32 %v448, %v692
      %v709 = vmax.f32 %v453, %v697
      %v710 = vmax.f32 %v456, %v700
      %s711 = scalar_lea.vmem %s176, 76
      %v712 = vld [vmem:[%s711] sm:$0xf]
      %v713 = vld [vmem:[%s711 + $0x4] sm:$0xf]
      %v714 = vld [vmem:[%s711 + $0x8] sm:$0xf]
      %v715 = vld [vmem:[%s711 + $0xc] sm:$0xf]
      %v716 = vld [vmem:[%s711 + $0x10] sm:$0xf]
      %v717 = vld [vmem:[%s711 + $0x14] sm:$0xf]
      %v718 = vld [vmem:[%s711 + $0x18] sm:$0xf]
      %v719 = vld [vmem:[%s711 + $0x1c] sm:$0xf]
      %720 = vrot.lane.b32.xlu0 %v276, 12
      %v721 = vpop.permute.xlu0 %720
      %722 = vrot.lane.b32.xlu0 %v277, 12
      %v723 = vpop.permute.xlu0 %722
      %724 = vrot.lane.b32.xlu0 %v278, 12
      %v725 = vpop.permute.xlu0 %724
      %726 = vrot.lane.b32.xlu0 %v279, 12
      %v727 = vpop.permute.xlu0 %726
      %728 = vrot.lane.b32.xlu0 %v280, 12
      %v729 = vpop.permute.xlu0 %728
      %730 = vrot.lane.b32.xlu0 %v281, 12
      %v731 = vpop.permute.xlu0 %730
      %732 = vrot.lane.b32.xlu0 %v282, 12
      %v733 = vpop.permute.xlu0 %732
      %734 = vrot.lane.b32.xlu0 %v283, 12
      %v735 = vpop.permute.xlu0 %734
      %v744 = vunpack.c.l.b16 %v712
      %v745 = vunpack.c.l.b16 %v713
      %v746 = vunpack.c.l.b16 %v714
      %v747 = vunpack.c.l.b16 %v715
      %v748 = vunpack.c.l.b16 %v716
      %v749 = vunpack.c.l.b16 %v717
      %v750 = vunpack.c.l.b16 %v718
      %v751 = vunpack.c.l.b16 %v719
      %v752 = vpack.c.b16 %v744, %v744
      %v753 = vpack.c.b16 %v745, %v745
      %v754 = vpack.c.b16 %v746, %v746
      %v755 = vpack.c.b16 %v747, %v747
      %v756 = vpack.c.b16 %v748, %v748
      %v757 = vpack.c.b16 %v749, %v749
      %v758 = vpack.c.b16 %v750, %v750
      %v759 = vpack.c.b16 %v751, %v751
      %760 = vrot.lane.b32.xlu0 %v752, 24
      %v761 = vpop.permute.xlu0 %760
      %762 = vrot.lane.b32.xlu0 %v753, 24
      %v763 = vpop.permute.xlu0 %762
      %764 = vrot.lane.b32.xlu0 %v754, 24
      %v765 = vpop.permute.xlu0 %764
      %766 = vrot.lane.b32.xlu0 %v755, 24
      %v767 = vpop.permute.xlu0 %766
      %768 = vrot.lane.b32.xlu0 %v756, 24
      %v769 = vpop.permute.xlu0 %768
      %770 = vrot.lane.b32.xlu0 %v757, 24
      %v771 = vpop.permute.xlu0 %770
      %772 = vrot.lane.b32.xlu0 %v758, 24
      %v773 = vpop.permute.xlu0 %772
      %774 = vrot.lane.b32.xlu0 %v759, 24
      %v775 = vpop.permute.xlu0 %774
      %v778 = vsel %vm300, %v203, %v721
      %v781 = vsel %vm300, %v204, %v723
      %v784 = vsel %vm300, %v205, %v725
      %v787 = vsel %vm300, %v206, %v727
      %v790 = vsel %vm300, %v207, %v729
      %v793 = vsel %vm300, %v208, %v731
      %v796 = vsel %vm300, %v209, %v733
      %v799 = vsel %vm300, %v210, %v735
      %v801 = vsel %vm325, %v778, %v761
      %v803 = vsel %vm325, %v781, %v763
      %v805 = vsel %vm325, %v784, %v765
      %v807 = vsel %vm325, %v787, %v767
      %v809 = vsel %vm325, %v790, %v769
      %v811 = vsel %vm325, %v793, %v771
      %v813 = vsel %vm325, %v796, %v773
      %v815 = vsel %vm325, %v799, %v775
      %v824 = vunpack.c.l.b16 %v801
      %v825 = vunpack.c.l.b16 %v803
      %v826 = vunpack.c.l.b16 %v805
      %v827 = vunpack.c.l.b16 %v807
      %v828 = vunpack.c.l.b16 %v809
      %v829 = vunpack.c.l.b16 %v811
      %v830 = vunpack.c.l.b16 %v813
      %v831 = vunpack.c.l.b16 %v815
      %v832 = vpack.c.b16 %v825, %v824
      %v833 = vpack.c.b16 %v827, %v826
      %v834 = vpack.c.b16 %v829, %v828
      %v835 = vpack.c.b16 %v831, %v830
      %v837 = vsel %vm377, %v832, 0
      %v840 = vsel %vm377, %v833, 0
      %v843 = vsel %vm377, %v834, 0
      %v846 = vsel %vm377, %v835, 0
      %848 = vmatprep.subr.bf16.mxu0 0
      %849 = vmatpush1.bf16.msra.mxu0 %v372
      %850 = vmatprep.subr.bf16.mxu0 0
      %851 = vmatpush1.bf16.msra.mxu0 %v373
      %852 = vmatprep.subr.bf16.mxu0 0
      %853 = vmatpush1.bf16.msra.mxu0 %v392
      %854 = vmatprep.subr.bf16.mxu0 0
      %855 = vmatpush1.bf16.msra.mxu0 0
      %856 = vmatprep.subr.bf16.mxu0 0
      %857 = vmatpush1.bf16.msra.mxu0 0
      %858 = vmatprep.subr.bf16.mxu0 0
      %859 = vmatpush1.bf16.msra.mxu0 0
      %860 = vmatprep.subr.bf16.mxu0 0
      %861 = vmatpush1.bf16.msra.mxu0 0
      %862 = vmatprep.subr.bf16.mxu0 0
      %863 = vmatpush1.bf16.msra.mxu0 0
      %864 = vmatprep.subr.bf16.mxu0 0
      %865 = vmatpush1.bf16.msra.mxu0 0
      %866 = vmatprep.subr.bf16.mxu0 0
      %867 = vmatpush1.bf16.msra.mxu0 0
      %868 = vmatprep.subr.bf16.mxu0 0
      %869 = vmatpush1.bf16.msra.mxu0 0
      %870 = vmatprep.subr.bf16.mxu0 0
      %871 = vmatpush1.bf16.msra.mxu0 0
      %872 = vmatprep.subr.bf16.mxu0 0
      %873 = vmatpush1.bf16.msra.mxu0 0
      %874 = vmatprep.subr.bf16.mxu0 0
      %875 = vmatpush1.bf16.msra.mxu0 0
      %876 = vmatprep.subr.bf16.mxu0 0
      %877 = vmatpush1.bf16.msra.mxu0 0
      %878 = vmatprep.subr.bf16.mxu0 0
      %879 = vmatpush1.bf16.msra.mxu0 0
      %880 = vmatprep.mubr.bf16.mxu0 0
      %881 = vmatmul.mubr.bf16.gmra.mrb[0].mxu0 %v837
      %v882 = vpop.f32.mrb[0].mxu0
      %v883 = vadd.f32 0.0, %v882
      %v884 = vpop.f32.mrb[0].mxu0
      %v885 = vpop.f32.mrb[0].mxu0
      %v886 = vadd.f32 0.0, %v885
      %v887 = vpop.f32.mrb[0].mxu0
      %888 = vmatprep.mubr.bf16.mxu0 0
      %889 = vmatmul.mubr.bf16.gmra.mrb[0].mxu0 %v840
      %v890 = vpop.f32.mrb[0].mxu0
      %v891 = vadd.f32 0.0, %v890
      %v892 = vpop.f32.mrb[0].mxu0
      %v893 = vpop.f32.mrb[0].mxu0
      %v894 = vadd.f32 0.0, %v893
      %v895 = vpop.f32.mrb[0].mxu0
      %896 = vmatprep.mubr.bf16.mxu0 0
      %897 = vmatmul.mubr.bf16.gmra.mrb[0].mxu0 %v843
      %v898 = vpop.f32.mrb[0].mxu0
      %v899 = vadd.f32 0.0, %v898
      %v900 = vpop.f32.mrb[0].mxu0
      %v901 = vpop.f32.mrb[0].mxu0
      %v902 = vadd.f32 0.0, %v901
      %v903 = vpop.f32.mrb[0].mxu0
      %904 = vmatprep.mubr.bf16.mxu0 0
      %905 = vmatmul.mubr.bf16.gmra.mrb[0].mxu0 %v846
      %v906 = vpop.f32.mrb[0].mxu0
      %v907 = vadd.f32 0.0, %v906
      %v908 = vpop.f32.mrb[0].mxu0
      %v909 = vpop.f32.mrb[0].mxu0
      %v910 = vadd.f32 0.0, %v909
      %v911 = vpop.f32.mrb[0].mxu0
      %912 = vdwg.mxu0
      %v913 = vmax.f32 %v703, %v883
      %v914 = vmax.f32 %v704, %v886
      %v915 = vmax.f32 %v705, %v891
      %v916 = vmax.f32 %v706, %v894
      %v917 = vmax.f32 %v707, %v899
      %v918 = vmax.f32 %v708, %v902
      %v919 = vmax.f32 %v709, %v907
      %v920 = vmax.f32 %v710, %v910
      %s921 = scalar_lea.vmem %s176, 112
      %v922 = vld [vmem:[%s921] sm:$0xf]
      %v923 = vld [vmem:[%s921 + $0x4] sm:$0xf]
      %v924 = vld [vmem:[%s921 + $0x8] sm:$0xf]
      %v925 = vld [vmem:[%s921 + $0xc] sm:$0xf]
      %v926 = vld [vmem:[%s921 + $0x10] sm:$0xf]
      %v927 = vld [vmem:[%s921 + $0x14] sm:$0xf]
      %v928 = vld [vmem:[%s921 + $0x18] sm:$0xf]
      %v929 = vld [vmem:[%s921 + $0x1c] sm:$0xf]
      %930 = vrot.lane.b32.xlu0 %v542, 12
      %v931 = vpop.permute.xlu0 %930
      %932 = vrot.lane.b32.xlu0 %v543, 12
      %v933 = vpop.permute.xlu0 %932
      %934 = vrot.lane.b32.xlu0 %v544, 12
      %v935 = vpop.permute.xlu0 %934
      %936 = vrot.lane.b32.xlu0 %v545, 12
      %v937 = vpop.permute.xlu0 %936
      %938 = vrot.lane.b32.xlu0 %v546, 12
      %v939 = vpop.permute.xlu0 %938
      %940 = vrot.lane.b32.xlu0 %v547, 12
      %v941 = vpop.permute.xlu0 %940
      %942 = vrot.lane.b32.xlu0 %v548, 12
      %v943 = vpop.permute.xlu0 %942
      %944 = vrot.lane.b32.xlu0 %v549, 12
      %v945 = vpop.permute.xlu0 %944
      %v954 = vunpack.c.l.b16 %v922
      %v955 = vunpack.c.l.b16 %v923
      %v956 = vunpack.c.l.b16 %v924
      %v957 = vunpack.c.l.b16 %v925
      %v958 = vunpack.c.l.b16 %v926
      %v959 = vunpack.c.l.b16 %v927
      %v960 = vunpack.c.l.b16 %v928
      %v961 = vunpack.c.l.b16 %v929
      %v962 = vpack.c.b16 %v954, %v954
      %v963 = vpack.c.b16 %v955, %v955
      %v964 = vpack.c.b16 %v956, %v956
      %v965 = vpack.c.b16 %v957, %v957
      %v966 = vpack.c.b16 %v958, %v958
      %v967 = vpack.c.b16 %v959, %v959
      %v968 = vpack.c.b16 %v960, %v960
      %v969 = vpack.c.b16 %v961, %v961
      %970 = vrot.lane.b32.xlu0 %v962, 24
      %v971 = vpop.permute.xlu0 %970
      %972 = vrot.lane.b32.xlu0 %v963, 24
      %v973 = vpop.permute.xlu0 %972
      %974 = vrot.lane.b32.xlu0 %v964, 24
      %v975 = vpop.permute.xlu0 %974
      %976 = vrot.lane.b32.xlu0 %v965, 24
      %v977 = vpop.permute.xlu0 %976
      %978 = vrot.lane.b32.xlu0 %v966, 24
      %v979 = vpop.permute.xlu0 %978
      %980 = vrot.lane.b32.xlu0 %v967, 24
      %v981 = vpop.permute.xlu0 %980
      %982 = vrot.lane.b32.xlu0 %v968, 24
      %v983 = vpop.permute.xlu0 %982
      %984 = vrot.lane.b32.xlu0 %v969, 24
      %v985 = vpop.permute.xlu0 %984
      %v988 = vsel %vm300, %v469, %v931
      %v991 = vsel %vm300, %v470, %v933
      %v994 = vsel %vm300, %v471, %v935
      %v997 = vsel %vm300, %v472, %v937
      %v1000 = vsel %vm300, %v473, %v939
      %v1003 = vsel %vm300, %v474, %v941
      %v1006 = vsel %vm300, %v475, %v943
      %v1009 = vsel %vm300, %v476, %v945
      %v1011 = vsel %vm325, %v988, %v971
      %v1013 = vsel %vm325, %v991, %v973
      %v1015 = vsel %vm325, %v994, %v975
      %v1017 = vsel %vm325, %v997, %v977
      %v1019 = vsel %vm325, %v1000, %v979
      %v1021 = vsel %vm325, %v1003, %v981
      %v1023 = vsel %vm325, %v1006, %v983
      %v1025 = vsel %vm325, %v1009, %v985
      %v1034 = vunpack.c.l.b16 %v1011
      %v1035 = vunpack.c.l.b16 %v1013
      %v1036 = vunpack.c.l.b16 %v1015
      %v1037 = vunpack.c.l.b16 %v1017
      %v1038 = vunpack.c.l.b16 %v1019
      %v1039 = vunpack.c.l.b16 %v1021
      %v1040 = vunpack.c.l.b16 %v1023
      %v1041 = vunpack.c.l.b16 %v1025
      %v1042 = vpack.c.b16 %v1035, %v1034
      %v1043 = vpack.c.b16 %v1037, %v1036
      %v1044 = vpack.c.b16 %v1039, %v1038
      %v1045 = vpack.c.b16 %v1041, %v1040
      %v1047 = vsel %vm377, %v1042, 0
      %v1050 = vsel %vm377, %v1043, 0
      %v1053 = vsel %vm377, %v1044, 0
      %v1056 = vsel %vm377, %v1045, 0
      %1058 = vmatprep.subr.bf16.mxu0 0
      %1059 = vmatpush1.bf16.msra.mxu0 %v372
      %1060 = vmatprep.subr.bf16.mxu0 0
      %1061 = vmatpush1.bf16.msra.mxu0 %v373
      %1062 = vmatprep.subr.bf16.mxu0 0
      %1063 = vmatpush1.bf16.msra.mxu0 %v392
      %1064 = vmatprep.subr.bf16.mxu0 0
      %1065 = vmatpush1.bf16.msra.mxu0 0
      %1066 = vmatprep.subr.bf16.mxu0 0
      %1067 = vmatpush1.bf16.msra.mxu0 0
      %1068 = vmatprep.subr.bf16.mxu0 0
      %1069 = vmatpush1.bf16.msra.mxu0 0
      %1070 = vmatprep.subr.bf16.mxu0 0
      %1071 = vmatpush1.bf16.msra.mxu0 0
      %1072 = vmatprep.subr.bf16.mxu0 0
      %1073 = vmatpush1.bf16.msra.mxu0 0
      %1074 = vmatprep.subr.bf16.mxu0 0
      %1075 = vmatpush1.bf16.msra.mxu0 0
      %1076 = vmatprep.subr.bf16.mxu0 0
      %1077 = vmatpush1.bf16.msra.mxu0 0
      %1078 = vmatprep.subr.bf16.mxu0 0
      %1079 = vmatpush1.bf16.msra.mxu0 0
      %1080 = vmatprep.subr.bf16.mxu0 0
      %1081 = vmatpush1.bf16.msra.mxu0 0
      %1082 = vmatprep.subr.bf16.mxu0 0
      %1083 = vmatpush1.bf16.msra.mxu0 0
      %1084 = vmatprep.subr.bf16.mxu0 0
      %1085 = vmatpush1.bf16.msra.mxu0 0
      %1086 = vmatprep.subr.bf16.mxu0 0
      %1087 = vmatpush1.bf16.msra.mxu0 0
      %1088 = vmatprep.subr.bf16.mxu0 0
      %1089 = vmatpush1.bf16.msra.mxu0 0
      %1090 = vmatprep.mubr.bf16.mxu0 0
      %1091 = vmatmul.mubr.bf16.gmra.mrb[0].mxu0 %v1047
      %v1092 = vpop.f32.mrb[0].mxu0
      %v1093 = vadd.f32 0.0, %v1092
      %v1094 = vpop.f32.mrb[0].mxu0
      %v1095 = vpop.f32.mrb[0].mxu0
      %v1096 = vadd.f32 0.0, %v1095
      %v1097 = vpop.f32.mrb[0].mxu0
      %1098 = vmatprep.mubr.bf16.mxu0 0
      %1099 = vmatmul.mubr.bf16.gmra.mrb[0].mxu0 %v1050
      %v1100 = vpop.f32.mrb[0].mxu0
      %v1101 = vadd.f32 0.0, %v1100
      %v1102 = vpop.f32.mrb[0].mxu0
      %v1103 = vpop.f32.mrb[0].mxu0
      %v1104 = vadd.f32 0.0, %v1103
      %v1105 = vpop.f32.mrb[0].mxu0
      %1106 = vmatprep.mubr.bf16.mxu0 0
      %1107 = vmatmul.mubr.bf16.gmra.mrb[0].mxu0 %v1053
      %v1108 = vpop.f32.mrb[0].mxu0
      %v1109 = vadd.f32 0.0, %v1108
      %v1110 = vpop.f32.mrb[0].mxu0
      %v1111 = vpop.f32.mrb[0].mxu0
      %v1112 = vadd.f32 0.0, %v1111
      %v1113 = vpop.f32.mrb[0].mxu0
      %1114 = vmatprep.mubr.bf16.mxu0 0
      %1115 = vmatmul.mubr.bf16.gmra.mrb[0].mxu0 %v1056
      %v1116 = vpop.f32.mrb[0].mxu0
      %v1117 = vadd.f32 0.0, %v1116
      %v1118 = vpop.f32.mrb[0].mxu0
      %v1119 = vpop.f32.mrb[0].mxu0
      %v1120 = vadd.f32 0.0, %v1119
      %v1121 = vpop.f32.mrb[0].mxu0
      %1122 = vdwg.mxu0
      %v1123 = vmax.f32 %v913, %v1093
      %v1124 = vmax.f32 %v914, %v1096
      %v1125 = vmax.f32 %v915, %v1101
      %v1126 = vmax.f32 %v916, %v1104
      %v1127 = vmax.f32 %v917, %v1109
      %v1128 = vmax.f32 %v918, %v1112
      %v1129 = vmax.f32 %v919, %v1117
      %v1130 = vmax.f32 %v920, %v1120
      %v1131 = vpack.c.bf16 %v1124, %v1123
      %v1132 = vpack.c.bf16 %v1126, %v1125
      %v1133 = vpack.c.bf16 %v1128, %v1127
      %v1134 = vpack.c.bf16 %v1130, %v1129
      %v1139 = vunpack.c.l.b16 %v1131
      %v1140 = vunpack.c.h.b16 %v1131
      %v1141 = vunpack.c.l.b16 %v1132
      %v1142 = vunpack.c.h.b16 %v1132
      %v1143 = vunpack.c.l.b16 %v1133
      %v1144 = vunpack.c.h.b16 %v1133
      %v1145 = vunpack.c.l.b16 %v1134
      %v1146 = vunpack.c.h.b16 %v1134
      %v1147 = vpack.c.b16 %v1139, %v1139
      %v1148 = vpack.c.b16 %v1140, %v1140
      %v1149 = vpack.c.b16 %v1141, %v1141
      %v1150 = vpack.c.b16 %v1142, %v1142
      %v1151 = vpack.c.b16 %v1143, %v1143
      %v1152 = vpack.c.b16 %v1144, %v1144
      %v1153 = vpack.c.b16 %v1145, %v1145
      %v1154 = vpack.c.b16 %v1146, %v1146
      %1163 = vst [vmem:[%s182] sm:$0xf] %v1147
      %1164 = vst [vmem:[%s182 + $0x4] sm:$0xf] %v1148
      %1165 = vst [vmem:[%s182 + $0x8] sm:$0xf] %v1149
      %1166 = vst [vmem:[%s182 + $0xc] sm:$0xf] %v1150
      %1167 = vst [vmem:[%s182 + $0x10] sm:$0xf] %v1151
      %1168 = vst [vmem:[%s182 + $0x14] sm:$0xf] %v1152
      %1169 = vst [vmem:[%s182 + $0x18] sm:$0xf] %v1153
      %1170 = vst [vmem:[%s182 + $0x1c] sm:$0xf] %v1154
      %v1171 = vadd.f32 %v1123, %v1124
      %v1172 = vadd.f32 %v1171, %v1125
      %v1173 = vadd.f32 %v1172, %v1126
      %v1174 = vadd.f32 %v1173, %v1127
      %v1175 = vadd.f32 %v1174, %v1128
      %v1176 = vadd.f32 %v1175, %v1129
      %v1177 = vadd.f32 %v1176, %v1130
      %v1178 = vrot.slane %v1177, 4
      %v1179 = vadd.f32 %v1177, %v1178
      %v1180 = vrot.slane %v1179, 2
      %v1181 = vadd.f32 %v1179, %v1180
      %v1182 = vrot.slane %v1181, 1
      %v1183 = vadd.f32 %v1181, %v1182
      %v1184 = vmul.f32 %v1123, %v1123
      %v1185 = vmul.f32 %v1124, %v1124
      %v1186 = vmul.f32 %v1125, %v1125
      %v1187 = vmul.f32 %v1126, %v1126
      %v1188 = vmul.f32 %v1127, %v1127
      %v1189 = vmul.f32 %v1128, %v1128
      %v1190 = vmul.f32 %v1129, %v1129
      %v1191 = vmul.f32 %v1130, %v1130
      %v1192 = vadd.f32 %v1184, %v1185
      %v1193 = vadd.f32 %v1192, %v1186
      %v1194 = vadd.f32 %v1193, %v1187
      %v1195 = vadd.f32 %v1194, %v1188
      %v1196 = vadd.f32 %v1195, %v1189
      %v1197 = vadd.f32 %v1196, %v1190
      %v1198 = vadd.f32 %v1197, %v1191
      %v1199 = vrot.slane %v1198, 4
      %v1200 = vadd.f32 %v1198, %v1199
      %v1201 = vrot.slane %v1200, 2
      %v1202 = vadd.f32 %v1200, %v1201
      %v1203 = vrot.slane %v1202, 1
      %v1204 = vadd.f32 %v1202, %v1203
      %vm1205 = vcmask 1040384
      %v1206 = vsel %vm1205, %v1183, %v1204
      %v1207 = vsel %vm390, %v1206, 0.0
      %1208 = vst [vmem:[%s187] sm:$0xff] %v1207
      %s1209 = smul.u32 8, %s15
      %p1210 = scmp.lt.s32.totalorder %s1209, 15
      %s1211 = scalar_select %p1210, %s1209, 15
      %s1212 = smul.addr %s1211, 4
      %s1213 = scalar_lea.vmem %s2, %s1212
      %p1214 = scmp.lt.s32.totalorder %s15, 1
      %s1215 = scalar_select %p1214, %s15, 1
      %s1216 = smul.addr %s1215, 8
      %s1217 = scalar_lea.vmem %s3, %s1216
      // Predicated region
      $region29: #{maxblock_forward.2} parent=27 // pred_check
        %p1218 = pneg %p80
      $region30: #{maxblock_forward.2} parent=27 // pred_check_branch
        %1220 = sbr.rel (%p1218) target = $region32
      $region31: #{maxblock_forward.2} parent=27 // pred_region
        %s1221 = smul.u32 8, %s15
      $region32: #{maxblock_forward.2} parent=27 // pred_fallthru
        _
      // Predicated region
      $region33: #{maxblock_forward.2} parent=27 // pred_check
        %p1222 = pneg %p106
      $region34: #{maxblock_forward.2} parent=27 // pred_check_branch
        %1224 = sbr.rel (%p1222) target = $region36
      $region35: #{maxblock_forward.2} parent=27 // pred_region
        _
      $region36: #{maxblock_forward.2} parent=27 // pred_fallthru
        _
    $region28: #{maxblock_forward.2} parent=5 // pred_fallthru
      _
    %p1225 = scmp.le.s32.totalorder 2, %s10
    // Predicated region
    $region37: #{maxblock_forward.2} parent=5 // pred_check
      %p1226 = pneg %p1225
    $region38: #{maxblock_forward.2} parent=5 // pred_check_branch
      %1228 = sbr.rel (%p1226) target = $region40
    $region39: #{maxblock_forward.2} parent=5 // pred_region
      %s1229 = ssub.s32 %s10, 2
      // Predicated region
      $region41: #{maxblock_forward.2} parent=39 // pred_check
        %p1230 = pneg %p86
      $region42: #{maxblock_forward.2} parent=39 // pred_check_branch
        %1232 = sbr.rel (%p1230) target = $region44
      $region43: #{maxblock_forward.2} parent=39 // pred_region
        %s1233 = smul.u32 8, %s16
        %p1234 = scmp.lt.s32.totalorder %s1233, 15
        %s1235 = scalar_select %p1234, %s1233, 15
        %s1236 = smul.addr %s1235, 4
        %s1237 = scalar_lea.vmem %s2, %s1236
      $region44: #{maxblock_forward.2} parent=39 // pred_fallthru
        _
      // Predicated region
      $region45: #{maxblock_forward.2} parent=39 // pred_check
        %p1238 = pneg %p112
      $region46: #{maxblock_forward.2} parent=39 // pred_check_branch
        %1240 = sbr.rel (%p1238) target = $region48
      $region47: #{maxblock_forward.2} parent=39 // pred_region
        %p1241 = scmp.lt.s32.totalorder %s16, 1
        %s1242 = scalar_select %p1241, %s16, 1
        %s1243 = smul.addr %s1242, 8
        %s1244 = scalar_lea.vmem %s3, %s1243
      $region48: #{maxblock_forward.2} parent=39 // pred_fallthru
        _
    $region40: #{maxblock_forward.2} parent=5 // pred_fallthru
      _
  $region6: #{maxblock_forward.2} parent=0 // loop_footer
    %s14 = sadd.s32 1, %s10
  $region7: #{maxblock_forward.2} parent=0 // loop_footer_branch
    %9 = sbr.rel target = $region3
  $region8: #{maxblock_forward.2} parent=0 // loop_exit
    _

</llo_original>
